<compile_context>
chip_gen: v5e
topology: v5e:2x2
jax: 0.10.0
libtpu: 0.0.40
codegen_flags: <defaults>
</compile_context>

<pallas_src>
import functools

import jax
import jax.numpy as jnp
from jax.experimental import pallas as pl
from jax.experimental.pallas import tpu as pltpu


def _gat_kernel(h_ref, w_ref, a_pair_ref, adj_ref, bias_ref, out_ref,
                *, heads, f_out):
    # h_ref:      (1, N, F_in)
    # w_ref:      (F_in, H*F_out)        heads fused along lanes
    # a_pair_ref: (H*F_out, 2H)          block-diag [a_src | a_dst]
    # adj_ref:    (1, N, N)  int8 {0,1}
    # bias_ref:   (1, H*F_out)
    # out_ref:    (1, N, H*F_out)
    h = h_ref[0]                                                  # (N, F_in)

    # One wide matmul for all heads (MXU).
    hp = jnp.dot(h, w_ref[...], preferred_element_type=jnp.float32)  # (N, H*F_out)
    t = jnp.tanh(hp)

    # Per-node src/dst logits for every head with a single skinny matmul:
    # logits[:, h]   = tanh(h_prime_h) @ a_src_h
    # logits[:, H+h] = tanh(h_prime_h) @ a_dst_h
    logits = jnp.dot(t, a_pair_ref[...], preferred_element_type=jnp.float32)  # (N, 2H)

    # Adjacency mask (int8 -> f32 unpack once, reused by every head).
    mask = adj_ref[0].astype(jnp.float32) > 0.0                   # (N, N)

    outs = []
    for hd in range(heads):
        src = logits[:, hd:hd + 1]                                # (N, 1)
        dst = logits[:, heads + hd:heads + hd + 1]                # (N, 1)
        a = src + dst.reshape(1, -1)                              # (N, N)

        # Fused LeakyReLU(0.2) + masked_fill(-inf) in a single select pass.
        a = jnp.where(mask, jnp.where(a > 0, a, 0.2 * a), -jnp.inf)

        # Row softmax with deferred normalization.
        m = jnp.max(a, axis=-1, keepdims=True)
        e = jnp.exp(a - m)                                        # (N, N), in [0, 1]
        s = jnp.sum(e, axis=-1, keepdims=True)                    # (N, 1)

        hp_h = hp[:, hd * f_out:(hd + 1) * f_out]                 # (N, F_out)
        o = jnp.dot(e.astype(jnp.bfloat16), hp_h.astype(jnp.bfloat16),
                    preferred_element_type=jnp.float32)           # (N, F_out)
        outs.append(o * pl.reciprocal(s, approx=True))

    out = jnp.concatenate(outs, axis=-1)                          # (N, H*F_out)
    out_ref[0] = (out + bias_ref[...]).astype(out_ref.dtype)      # lane-dense store


def multi_head_graph_attention(h, adj, w, a_src, a_dst, bias):
    """h: (B, N, F_in); adj: (B, N, N) {0,1}; w: (H, F_in, F_out);
    a_src/a_dst: (H, F_out); bias: (F_out,) -> (B, H, N, F_out)"""
    B, N, F_in = h.shape
    H, _, F_out = w.shape
    HF = H * F_out

    # --- wrapper-side layout plumbing (one-time, outside the kernel) -------
    # Fuse heads along the lane dimension of w.
    w_all = jnp.transpose(w, (1, 0, 2)).reshape(F_in, HF).astype(jnp.float32)

    # Block-diagonal (H*F_out, 2H): columns [0:H] carry a_src, [H:2H] a_dst.
    eye = jnp.eye(H, dtype=jnp.float32)
    a_src_blk = (a_src[:, :, None] * eye[:, None, :]).reshape(HF, H)
    a_dst_blk = (a_dst[:, :, None] * eye[:, None, :]).reshape(HF, H)
    a_pair = jnp.concatenate([a_src_blk, a_dst_blk], axis=1)      # (HF, 2H)

    bias_all = jnp.tile(bias.astype(jnp.float32), (H,)).reshape(1, HF)

    # adj as int8: 4x less HBM traffic / VMEM footprint than f32.
    adj_i8 = (adj != 0).astype(jnp.int8)

    kernel = functools.partial(_gat_kernel, heads=H, f_out=F_out)

    # Cost estimate (advisory, for XLA scheduling around the custom call).
    flops = 2 * B * N * (F_in * HF + HF * 2 * H) + 2 * B * H * N * N * F_out
    transcendentals = B * (N * HF + H * N * N + H * N)
    bytes_accessed = (B * N * F_in * 4 + B * N * N        # h + int8 adj
                      + F_in * HF * 4 + HF * 2 * H * 4 + HF * 4
                      + B * N * HF * 4)                    # output

    # Explicit VMEM budget: double-buffered per-step I/O + in-kernel temporaries.
    per_step_io = (N * F_in + F_in * HF + HF * 2 * H + HF + N * HF) * 4 + N * N
    temps = (4 * N * N + 3 * N * HF) * 4
    budget = 2 * per_step_io + temps
    vmem_limit = int(min(max(4 * budget, 32 * 1024 * 1024), 64 * 1024 * 1024))

    out_flat = pl.pallas_call(
        kernel,
        out_shape=jax.ShapeDtypeStruct((B, N, HF), jnp.float32),
        grid_spec=pltpu.PrefetchScalarGridSpec(
            num_scalar_prefetch=0,
            grid=(B,),
            in_specs=[
                pl.BlockSpec((1, N, F_in), lambda b: (b, 0, 0)),   # h
                pl.BlockSpec((F_in, HF), lambda b: (0, 0)),        # w (all heads)
                pl.BlockSpec((HF, 2 * H), lambda b: (0, 0)),       # a_pair
                pl.BlockSpec((1, N, N), lambda b: (b, 0, 0)),      # adj int8
                pl.BlockSpec((1, HF), lambda b: (0, 0)),           # bias
            ],
            out_specs=pl.BlockSpec((1, N, HF), lambda b: (b, 0, 0)),
        ),
        compiler_params=pltpu.CompilerParams(
            dimension_semantics=("parallel",),
            vmem_limit_bytes=vmem_limit),
        cost_estimate=pl.CostEstimate(
            flops=flops,
            transcendentals=transcendentals,
            bytes_accessed=bytes_accessed),
    )(h.astype(jnp.float32), w_all, a_pair, adj_i8, bias_all)

    # (B, N, H*F_out) -> (B, H, N, F_out) to match the PyTorch module's layout.
    return out_flat.reshape(B, N, H, F_out).transpose(0, 2, 1, 3)


def _xavier_uniform(key, shape, fan_in, fan_out):
    bound = (6.0 / (fan_in + fan_out)) ** 0.5
    return jax.random.uniform(key, shape, jnp.float32, -bound, bound)


def _reference(h, adj, w, a_src, a_dst, bias):
    # pure-JAX f32 reference mirroring the PyTorch forward
    h_prime = jnp.einsum("bnf,hfo->bhno", h, w)
    t = jnp.tanh(h_prime)
    attn_src = jnp.einsum("bhno,ho->bhn", t, a_src)[..., :, None]
    attn_dst = jnp.einsum("bhno,ho->bhn", t, a_dst)[..., None, :]
    attn = attn_src + attn_dst
    attn = jnp.where(attn > 0, attn, 0.2 * attn)
    attn = jnp.where(adj[:, None, :, :] > 0, attn, -jnp.inf)
    attn = jax.nn.softmax(attn, axis=-1)
    out = jnp.einsum("bhnm,bhmo->bhno", attn, h_prime)
    return out + bias


if __name__ == "__main__":
    B, N, F_in, F_out, H = 2, 8, 16, 32, 4

    key = jax.random.PRNGKey(0)
    k_h, k_adj, k_w, k_as, k_ad = jax.random.split(key, 5)

    h = jax.random.normal(k_h, (B, N, F_in), jnp.float32)

    # random adjacency with self-loops (avoid fully-masked rows -> NaN, same as torch)
    adj = (jax.random.uniform(k_adj, (B, N, N)) > 0.5).astype(jnp.float32)
    adj = jnp.maximum(adj, jnp.eye(N, dtype=jnp.float32)[None])

    w = _xavier_uniform(k_w, (H, F_in, F_out), F_in, F_out)
    a_src = _xavier_uniform(k_as, (H, F_out), F_out, 1)
    a_dst = _xavier_uniform(k_ad, (H, F_out), F_out, 1)
    bias = jnp.zeros((F_out,), jnp.float32)

    out = multi_head_graph_attention(h, adj, w, a_src, a_dst, bias)
    out = jax.block_until_ready(out)

    ref = _reference(h, adj, w, a_src, a_dst, bias)
    assert out.shape == (B, H, N, F_out)
    # Tolerance loosened vs pure-f32 because the kernel uses bf16 operands on
    # the attention@value matmul and an approximate reciprocal (per perf review).
    assert jnp.allclose(out, ref, atol=2e-2, rtol=2e-2), "mismatch vs reference"

    print("KERNEL_OK")
</pallas_src>

<mosaic_0001>
module attributes {stable_mosaic.version = 11 : i64} {
  func.func @_gat_kernel(%arg0: i32, %arg1: memref<1x8x16xf32, #tpu.memory_space<vmem>>, %arg2: memref<16x128xf32, #tpu.memory_space<vmem>>, %arg3: memref<128x8xf32, #tpu.memory_space<vmem>>, %arg4: memref<1x8x8xi8, #tpu.memory_space<vmem>>, %arg5: memref<1x128xf32, #tpu.memory_space<vmem>>, %arg6: memref<1x8x128xf32, #tpu.memory_space<vmem>>) attributes {dimension_semantics = [#tpu.dimension_semantics<parallel>], iteration_bounds = array<i64: 2>, scalar_prefetch = 0 : i64, scratch_operands = 0 : i64, tpu.core_type = #tpu.core_type<tc>, window_params = [{transform_indices = @transform_0, window_bounds = array<i64: 1, 8, 16>}, {pipeline_mode = #tpu.pipeline_mode<synchronous>, transform_indices = @transform_1, window_bounds = array<i64: 16, 128>}, {pipeline_mode = #tpu.pipeline_mode<synchronous>, transform_indices = @transform_2, window_bounds = array<i64: 128, 8>}, {transform_indices = @transform_3, window_bounds = array<i64: 1, 8, 8>}, {pipeline_mode = #tpu.pipeline_mode<synchronous>, transform_indices = @transform_4, window_bounds = array<i64: 1, 128>}, {transform_indices = @transform_5, window_bounds = array<i64: 1, 8, 128>}]} {
    %c0 = arith.constant 0 : index
    %c0_0 = arith.constant 0 : index
    %c0_1 = arith.constant 0 : index
    %0 = vector.load %arg1[%c0, %c0_0, %c0_1] : memref<1x8x16xf32, #tpu.memory_space<vmem>>, vector<1x8x16xf32>
    %1 = vector.shape_cast %0 : vector<1x8x16xf32> to vector<8x16xf32>
    %c0_2 = arith.constant 0 : index
    %c0_3 = arith.constant 0 : index
    %2 = vector.load %arg2[%c0_2, %c0_3] : memref<16x128xf32, #tpu.memory_space<vmem>>, vector<16x128xf32>
    %cst = arith.constant dense<0.000000e+00> : vector<8x128xf32>
    %3 = tpu.matmul %1, %2, %cst {dimension_numbers = #tpu.dot_dimension_numbers<[1], [0], [0], [1], [0, 0, 1, 1], [], []>} : vector<8x16xf32>, vector<16x128xf32>, vector<8x128xf32> -> vector<8x128xf32>
    %4 = math.tanh %3 : vector<8x128xf32>
    %c0_4 = arith.constant 0 : index
    %c0_5 = arith.constant 0 : index
    %5 = vector.load %arg3[%c0_4, %c0_5] : memref<128x8xf32, #tpu.memory_space<vmem>>, vector<128x8xf32>
    %cst_6 = arith.constant dense<0.000000e+00> : vector<8x8xf32>
    %6 = tpu.matmul %4, %5, %cst_6 {dimension_numbers = #tpu.dot_dimension_numbers<[1], [0], [0], [1], [0, 0, 1, 1], [], []>} : vector<8x128xf32>, vector<128x8xf32>, vector<8x8xf32> -> vector<8x8xf32>
    %c0_7 = arith.constant 0 : index
    %c0_8 = arith.constant 0 : index
    %c0_9 = arith.constant 0 : index
    %7 = vector.load %arg4[%c0_7, %c0_8, %c0_9] : memref<1x8x8xi8, #tpu.memory_space<vmem>>, vector<1x8x8xi8>
    %8 = vector.shape_cast %7 : vector<1x8x8xi8> to vector<8x8xi8>
    %9 = arith.sitofp %8 : vector<8x8xi8> to vector<8x8xf32>
    %cst_10 = arith.constant 0.000000e+00 : f32
    %10 = vector.broadcast %cst_10 : f32 to vector<8x8xf32>
    %11 = arith.cmpf ogt, %9, %10 : vector<8x8xf32>
    %12 = vector.extract_strided_slice %6 {offsets = [0, 0], sizes = [8, 1], strides = [1, 1]} : vector<8x8xf32> to vector<8x1xf32>
    %13 = vector.extract_strided_slice %6 {offsets = [0, 4], sizes = [8, 1], strides = [1, 1]} : vector<8x8xf32> to vector<8x1xf32>
    %14 = vector.shape_cast %13 : vector<8x1xf32> to vector<1x8xf32>
    %15 = vector.broadcast %12 : vector<8x1xf32> to vector<8x8xf32>
    %16 = vector.broadcast %14 : vector<1x8xf32> to vector<8x8xf32>
    %17 = arith.addf %15, %16 : vector<8x8xf32>
    %cst_11 = arith.constant 0.000000e+00 : f32
    %18 = vector.broadcast %cst_11 : f32 to vector<8x8xf32>
    %19 = arith.cmpf ogt, %17, %18 : vector<8x8xf32>
    %cst_12 = arith.constant 2.000000e-01 : f32
    %20 = vector.broadcast %cst_12 : f32 to vector<8x8xf32>
    %21 = arith.mulf %20, %17 : vector<8x8xf32>
    %22 = arith.select %19, %17, %21 : vector<8x8xi1>, vector<8x8xf32>
    %cst_13 = arith.constant 0xFF800000 : f32
    %23 = vector.broadcast %cst_13 : f32 to vector<8x8xf32>
    %24 = arith.select %11, %22, %23 : vector<8x8xi1>, vector<8x8xf32>
    %cst_14 = arith.constant dense<0xFF800000> : vector<8xf32>
    %25 = vector.multi_reduction <maximumf>, %24, %cst_14 [1] : vector<8x8xf32> to vector<8xf32>
    %26 = vector.shape_cast %25 : vector<8xf32> to vector<8x1xf32>
    %27 = vector.broadcast %26 : vector<8x1xf32> to vector<8x8xf32>
    %28 = arith.subf %24, %27 : vector<8x8xf32>
    %29 = math.exp %28 : vector<8x8xf32>
    %cst_15 = arith.constant dense<0.000000e+00> : vector<8xf32>
    %30 = vector.multi_reduction <add>, %29, %cst_15 [1] : vector<8x8xf32> to vector<8xf32>
    %31 = vector.shape_cast %30 : vector<8xf32> to vector<8x1xf32>
    %32 = vector.extract_strided_slice %3 {offsets = [0, 0], sizes = [8, 32], strides = [1, 1]} : vector<8x128xf32> to vector<8x32xf32>
    %33 = arith.truncf %29 : vector<8x8xf32> to vector<8x8xbf16>
    %34 = arith.truncf %32 : vector<8x32xf32> to vector<8x32xbf16>
    %cst_16 = arith.constant dense<0.000000e+00> : vector<8x32xf32>
    %35 = tpu.matmul %33, %34, %cst_16 {dimension_numbers = #tpu.dot_dimension_numbers<[1], [0], [0], [1], [0, 0, 1, 1], [], []>} : vector<8x8xbf16>, vector<8x32xbf16>, vector<8x32xf32> -> vector<8x32xf32>
    %36 = tpu.reciprocal %31 {approx = true} : vector<8x1xf32> -> vector<8x1xf32>
    %37 = vector.broadcast %36 : vector<8x1xf32> to vector<8x32xf32>
    %38 = arith.mulf %35, %37 : vector<8x32xf32>
    %39 = vector.extract_strided_slice %6 {offsets = [0, 1], sizes = [8, 1], strides = [1, 1]} : vector<8x8xf32> to vector<8x1xf32>
    %40 = vector.extract_strided_slice %6 {offsets = [0, 5], sizes = [8, 1], strides = [1, 1]} : vector<8x8xf32> to vector<8x1xf32>
    %41 = vector.shape_cast %40 : vector<8x1xf32> to vector<1x8xf32>
    %42 = vector.broadcast %39 : vector<8x1xf32> to vector<8x8xf32>
    %43 = vector.broadcast %41 : vector<1x8xf32> to vector<8x8xf32>
    %44 = arith.addf %42, %43 : vector<8x8xf32>
    %cst_17 = arith.constant 0.000000e+00 : f32
    %45 = vector.broadcast %cst_17 : f32 to vector<8x8xf32>
    %46 = arith.cmpf ogt, %44, %45 : vector<8x8xf32>
    %cst_18 = arith.constant 2.000000e-01 : f32
    %47 = vector.broadcast %cst_18 : f32 to vector<8x8xf32>
    %48 = arith.mulf %47, %44 : vector<8x8xf32>
    %49 = arith.select %46, %44, %48 : vector<8x8xi1>, vector<8x8xf32>
    %cst_19 = arith.constant 0xFF800000 : f32
    %50 = vector.broadcast %cst_19 : f32 to vector<8x8xf32>
    %51 = arith.select %11, %49, %50 : vector<8x8xi1>, vector<8x8xf32>
    %cst_20 = arith.constant dense<0xFF800000> : vector<8xf32>
    %52 = vector.multi_reduction <maximumf>, %51, %cst_20 [1] : vector<8x8xf32> to vector<8xf32>
    %53 = vector.shape_cast %52 : vector<8xf32> to vector<8x1xf32>
    %54 = vector.broadcast %53 : vector<8x1xf32> to vector<8x8xf32>
    %55 = arith.subf %51, %54 : vector<8x8xf32>
    %56 = math.exp %55 : vector<8x8xf32>
    %cst_21 = arith.constant dense<0.000000e+00> : vector<8xf32>
    %57 = vector.multi_reduction <add>, %56, %cst_21 [1] : vector<8x8xf32> to vector<8xf32>
    %58 = vector.shape_cast %57 : vector<8xf32> to vector<8x1xf32>
    %59 = vector.extract_strided_slice %3 {offsets = [0, 32], sizes = [8, 32], strides = [1, 1]} : vector<8x128xf32> to vector<8x32xf32>
    %60 = arith.truncf %56 : vector<8x8xf32> to vector<8x8xbf16>
    %61 = arith.truncf %59 : vector<8x32xf32> to vector<8x32xbf16>
    %cst_22 = arith.constant dense<0.000000e+00> : vector<8x32xf32>
    %62 = tpu.matmul %60, %61, %cst_22 {dimension_numbers = #tpu.dot_dimension_numbers<[1], [0], [0], [1], [0, 0, 1, 1], [], []>} : vector<8x8xbf16>, vector<8x32xbf16>, vector<8x32xf32> -> vector<8x32xf32>
    %63 = tpu.reciprocal %58 {approx = true} : vector<8x1xf32> -> vector<8x1xf32>
    %64 = vector.broadcast %63 : vector<8x1xf32> to vector<8x32xf32>
    %65 = arith.mulf %62, %64 : vector<8x32xf32>
    %66 = vector.extract_strided_slice %6 {offsets = [0, 2], sizes = [8, 1], strides = [1, 1]} : vector<8x8xf32> to vector<8x1xf32>
    %67 = vector.extract_strided_slice %6 {offsets = [0, 6], sizes = [8, 1], strides = [1, 1]} : vector<8x8xf32> to vector<8x1xf32>
    %68 = vector.shape_cast %67 : vector<8x1xf32> to vector<1x8xf32>
    %69 = vector.broadcast %66 : vector<8x1xf32> to vector<8x8xf32>
    %70 = vector.broadcast %68 : vector<1x8xf32> to vector<8x8xf32>
    %71 = arith.addf %69, %70 : vector<8x8xf32>
    %cst_23 = arith.constant 0.000000e+00 : f32
    %72 = vector.broadcast %cst_23 : f32 to vector<8x8xf32>
    %73 = arith.cmpf ogt, %71, %72 : vector<8x8xf32>
    %cst_24 = arith.constant 2.000000e-01 : f32
    %74 = vector.broadcast %cst_24 : f32 to vector<8x8xf32>
    %75 = arith.mulf %74, %71 : vector<8x8xf32>
    %76 = arith.select %73, %71, %75 : vector<8x8xi1>, vector<8x8xf32>
    %cst_25 = arith.constant 0xFF800000 : f32
    %77 = vector.broadcast %cst_25 : f32 to vector<8x8xf32>
    %78 = arith.select %11, %76, %77 : vector<8x8xi1>, vector<8x8xf32>
    %cst_26 = arith.constant dense<0xFF800000> : vector<8xf32>
    %79 = vector.multi_reduction <maximumf>, %78, %cst_26 [1] : vector<8x8xf32> to vector<8xf32>
    %80 = vector.shape_cast %79 : vector<8xf32> to vector<8x1xf32>
    %81 = vector.broadcast %80 : vector<8x1xf32> to vector<8x8xf32>
    %82 = arith.subf %78, %81 : vector<8x8xf32>
    %83 = math.exp %82 : vector<8x8xf32>
    %cst_27 = arith.constant dense<0.000000e+00> : vector<8xf32>
    %84 = vector.multi_reduction <add>, %83, %cst_27 [1] : vector<8x8xf32> to vector<8xf32>
    %85 = vector.shape_cast %84 : vector<8xf32> to vector<8x1xf32>
    %86 = vector.extract_strided_slice %3 {offsets = [0, 64], sizes = [8, 32], strides = [1, 1]} : vector<8x128xf32> to vector<8x32xf32>
    %87 = arith.truncf %83 : vector<8x8xf32> to vector<8x8xbf16>
    %88 = arith.truncf %86 : vector<8x32xf32> to vector<8x32xbf16>
    %cst_28 = arith.constant dense<0.000000e+00> : vector<8x32xf32>
    %89 = tpu.matmul %87, %88, %cst_28 {dimension_numbers = #tpu.dot_dimension_numbers<[1], [0], [0], [1], [0, 0, 1, 1], [], []>} : vector<8x8xbf16>, vector<8x32xbf16>, vector<8x32xf32> -> vector<8x32xf32>
    %90 = tpu.reciprocal %85 {approx = true} : vector<8x1xf32> -> vector<8x1xf32>
    %91 = vector.broadcast %90 : vector<8x1xf32> to vector<8x32xf32>
    %92 = arith.mulf %89, %91 : vector<8x32xf32>
    %93 = vector.extract_strided_slice %6 {offsets = [0, 3], sizes = [8, 1], strides = [1, 1]} : vector<8x8xf32> to vector<8x1xf32>
    %94 = vector.extract_strided_slice %6 {offsets = [0, 7], sizes = [8, 1], strides = [1, 1]} : vector<8x8xf32> to vector<8x1xf32>
    %95 = vector.shape_cast %94 : vector<8x1xf32> to vector<1x8xf32>
    %96 = vector.broadcast %93 : vector<8x1xf32> to vector<8x8xf32>
    %97 = vector.broadcast %95 : vector<1x8xf32> to vector<8x8xf32>
    %98 = arith.addf %96, %97 : vector<8x8xf32>
    %cst_29 = arith.constant 0.000000e+00 : f32
    %99 = vector.broadcast %cst_29 : f32 to vector<8x8xf32>
    %100 = arith.cmpf ogt, %98, %99 : vector<8x8xf32>
    %cst_30 = arith.constant 2.000000e-01 : f32
    %101 = vector.broadcast %cst_30 : f32 to vector<8x8xf32>
    %102 = arith.mulf %101, %98 : vector<8x8xf32>
    %103 = arith.select %100, %98, %102 : vector<8x8xi1>, vector<8x8xf32>
    %cst_31 = arith.constant 0xFF800000 : f32
    %104 = vector.broadcast %cst_31 : f32 to vector<8x8xf32>
    %105 = arith.select %11, %103, %104 : vector<8x8xi1>, vector<8x8xf32>
    %cst_32 = arith.constant dense<0xFF800000> : vector<8xf32>
    %106 = vector.multi_reduction <maximumf>, %105, %cst_32 [1] : vector<8x8xf32> to vector<8xf32>
    %107 = vector.shape_cast %106 : vector<8xf32> to vector<8x1xf32>
    %108 = vector.broadcast %107 : vector<8x1xf32> to vector<8x8xf32>
    %109 = arith.subf %105, %108 : vector<8x8xf32>
    %110 = math.exp %109 : vector<8x8xf32>
    %cst_33 = arith.constant dense<0.000000e+00> : vector<8xf32>
    %111 = vector.multi_reduction <add>, %110, %cst_33 [1] : vector<8x8xf32> to vector<8xf32>
    %112 = vector.shape_cast %111 : vector<8xf32> to vector<8x1xf32>
    %113 = vector.extract_strided_slice %3 {offsets = [0, 96], sizes = [8, 32], strides = [1, 1]} : vector<8x128xf32> to vector<8x32xf32>
    %114 = arith.truncf %110 : vector<8x8xf32> to vector<8x8xbf16>
    %115 = arith.truncf %113 : vector<8x32xf32> to vector<8x32xbf16>
    %cst_34 = arith.constant dense<0.000000e+00> : vector<8x32xf32>
    %116 = tpu.matmul %114, %115, %cst_34 {dimension_numbers = #tpu.dot_dimension_numbers<[1], [0], [0], [1], [0, 0, 1, 1], [], []>} : vector<8x8xbf16>, vector<8x32xbf16>, vector<8x32xf32> -> vector<8x32xf32>
    %117 = tpu.reciprocal %112 {approx = true} : vector<8x1xf32> -> vector<8x1xf32>
    %118 = vector.broadcast %117 : vector<8x1xf32> to vector<8x32xf32>
    %119 = arith.mulf %116, %118 : vector<8x32xf32>
    %120 = tpu.concatenate %38, %65, %92, %119 in 1 : vector<8x32xf32>, vector<8x32xf32>, vector<8x32xf32>, vector<8x32xf32> -> vector<8x128xf32>
    %c0_35 = arith.constant 0 : index
    %c0_36 = arith.constant 0 : index
    %121 = vector.load %arg5[%c0_35, %c0_36] : memref<1x128xf32, #tpu.memory_space<vmem>>, vector<1x128xf32>
    %122 = vector.broadcast %121 : vector<1x128xf32> to vector<8x128xf32>
    %123 = arith.addf %120, %122 : vector<8x128xf32>
    %c0_37 = arith.constant 0 : index
    %c0_38 = arith.constant 0 : index
    %c0_39 = arith.constant 0 : index
    %124 = vector.load %arg6[%c0_37, %c0_38, %c0_39] : memref<1x8x128xf32, #tpu.memory_space<vmem>>, vector<1x8x128xf32>
    %125 = vector.shape_cast %124 : vector<1x8x128xf32> to vector<8x128xf32>
    %126 = vector.shape_cast %123 : vector<8x128xf32> to vector<1x8x128xf32>
    tpu.vector_store %arg6[%c0_37, %c0_38, %c0_39], %126 {strides = array<i32>} : memref<1x8x128xf32, #tpu.memory_space<vmem>>, vector<1x8x128xf32>,
    return
  }
  func.func @transform_0(%arg0: i32) -> (i32, i32, i32) {
    %c0_i32 = arith.constant 0 : i32
    %c0_i32_0 = arith.constant 0 : i32
    %c0_i32_1 = arith.constant 0 : i32
    return %arg0, %c0_i32, %c0_i32_0 : i32, i32, i32
  }
  func.func @transform_1(%arg0: i32) -> (i32, i32) {
    %c0_i32 = arith.constant 0 : i32
    %c0_i32_0 = arith.constant 0 : i32
    %c0_i32_1 = arith.constant 0 : i32
    return %c0_i32, %c0_i32_0 : i32, i32
  }
  func.func @transform_2(%arg0: i32) -> (i32, i32) {
    %c0_i32 = arith.constant 0 : i32
    %c0_i32_0 = arith.constant 0 : i32
    %c0_i32_1 = arith.constant 0 : i32
    return %c0_i32, %c0_i32_0 : i32, i32
  }
  func.func @transform_3(%arg0: i32) -> (i32, i32, i32) {
    %c0_i32 = arith.constant 0 : i32
    %c0_i32_0 = arith.constant 0 : i32
    %c0_i32_1 = arith.constant 0 : i32
    return %arg0, %c0_i32, %c0_i32_0 : i32, i32, i32
  }
  func.func @transform_4(%arg0: i32) -> (i32, i32) {
    %c0_i32 = arith.constant 0 : i32
    %c0_i32_0 = arith.constant 0 : i32
    %c0_i32_1 = arith.constant 0 : i32
    return %c0_i32, %c0_i32_0 : i32, i32
  }
  func.func @transform_5(%arg0: i32) -> (i32, i32, i32) {
    %c0_i32 = arith.constant 0 : i32
    %c0_i32_0 = arith.constant 0 : i32
    %c0_i32_1 = arith.constant 0 : i32
    return %arg0, %c0_i32, %c0_i32_0 : i32, i32, i32
  }
}

</mosaic_0001>

<llo_original>
// kernel: tpu_custom_call.1
$region0: #{tpu_custom_call.1}
  #allocation0 [shape = 'u32[]', space=smem, size = 0x4, offset = 0x4, fixed_abs, tag = 'smem constant byte address 0x4 - core index']
  #allocation1 [shape = 'u32[72,128]{1,0:T(1,128)}', space=vmem, size = 0x9000, scoped, tag = 'internal scratch']
  %s0 = inlined_call_operand.vmem [shape: f32[2,8,16], index: 0, kind: input, shape index: {}]
  %s1 = inlined_call_operand.vmem [shape: f32[16,128], index: 1, kind: input, shape index: {}]
  %s2 = inlined_call_operand.vmem [shape: f32[128,8], index: 2, kind: input, shape index: {}]
  %s3 = inlined_call_operand.vmem [shape: s8[2,8,8], index: 3, kind: input, shape index: {}]
  %s4 = inlined_call_operand.vmem [shape: f32[1,128], index: 4, kind: input, shape index: {}]
  %s5 = inlined_call_operand.hbm [shape: f32[2,8,128], index: 5, kind: output, shape index: {}]
  %s6 = sld [smem:[#allocation0]]
  $region53: #{tpu_custom_call.1} parent=0
    _
  %s8 = ssub.s32 1, %s6
  %s9 = scalar_select 0, %s8, %s6
  $region1: #{tpu_custom_call.1} parent=0
    #allocation2 [shape = 'u8[8192]{0}', space=vmem, size = 0x2000, scoped, tag = 'output window, operand 0']
    #allocation3 [shape = 's32[2]{0}', space=sflag, size = 0x8, scoped, tag = 'scoped memory for tpu_custom_call.1']
    %10 = vsyncpa [#allocation3], 0
    %s11 = scalar_lea.sflag [#allocation3], 1
    %12 = vsyncpa %s11, 0
    loop: start=0, step=1, limit=4
    $region2: #{tpu_custom_call.1} parent=1 // loop_pre_header
      _
    $region3: #{tpu_custom_call.1} parent=1 // loop_header
      %s14 = sphi 0, %s18
      %p15 = scmp.ge.s32.totalorder %s14, 4
      %s24 = sphi 0, %s26
      %s27 = sphi 0, %s24
      %s28 = sphi 0, %s27
      %s44 = sphi 0, %s28
      %s48 = sphi 0, %s48
      %s50 = sphi 0, %s48
      %s51 = sphi 0, %s50
      %s65 = sphi 0, %s51
      %s69 = sphi 0, %s69
      %s71 = sphi 0, %s69
      %s72 = sphi 0, %s71
      %s86 = sphi 0, %s72
      %s92 = sphi 0, %s94
      %s95 = sphi 0, %s92
      %s96 = sphi 0, %s95
      %s112 = sphi 0, %s96
      %s116 = sphi 0, %s116
      %s118 = sphi 0, %s116
      %s119 = sphi 0, %s118
      %s133 = sphi 0, %s119
      %s139 = sphi 0, %s141
      %s142 = sphi 0, %s139
      %s143 = sphi 0, %s142
      %s159 = sphi 0, %s143
    $region4: #{tpu_custom_call.1} parent=1 // loop_header_branch
      %17 = sbr.rel (%p15) target = $region8
    $region5: #{tpu_custom_call.1} parent=1 // loop_body
      %s19 = ssub.s32 %s14, 1
      %s20 = ssub.s32 %s14, 2
      %s21 = sadd.s32 %s14, 1
      %s22 = ssub.s32 %s14, %s21
      %p23 = scmp.eq.s32.totalorder %s22, 0
      %s25 = sadd.s32 %s24, 1
      %s26 = scalar_select %p23, %s24, %s25
      %p29 = pneg %p23
      %p30 = scmp.eq.s32.totalorder %s14, 1
      %p31 = por %p29, %p30
      %p32 = scmp.ne.s32.totalorder %s24, %s27
      %p33 = scmp.eq.s32.totalorder %s14, 0
      %p34 = por %p32, %p33
      %p35 = scmp.ne.s32.totalorder %s24, %s27
      %p36 = scmp.eq.s32.totalorder %s19, 1
      %p37 = por %p35, %p36
      %p38 = scmp.ne.s32.totalorder %s27, %s28
      %p39 = scmp.eq.s32.totalorder %s19, 0
      %p40 = por %p38, %p39
      %p41 = scmp.ne.s32.totalorder %s27, %s28
      %p42 = scmp.eq.s32.totalorder %s20, 1
      %p43 = por %p41, %p42
      %p45 = scmp.ne.s32.totalorder %s28, %s44
      %p46 = scmp.eq.s32.totalorder %s20, 0
      %p47 = por %p45, %p46
      %s49 = sadd.s32 %s48, 1
      %p52 = scmp.eq.s32.totalorder %s14, 1
      %p53 = scmp.ne.s32.totalorder %s48, %s50
      %p54 = scmp.eq.s32.totalorder %s14, 0
      %p55 = por %p53, %p54
      %p56 = scmp.ne.s32.totalorder %s48, %s50
      %p57 = scmp.eq.s32.totalorder %s19, 1
      %p58 = por %p56, %p57
      %p59 = scmp.ne.s32.totalorder %s50, %s51
      %p60 = scmp.eq.s32.totalorder %s19, 0
      %p61 = por %p59, %p60
      %p62 = scmp.ne.s32.totalorder %s50, %s51
      %p63 = scmp.eq.s32.totalorder %s20, 1
      %p64 = por %p62, %p63
      %p66 = scmp.ne.s32.totalorder %s51, %s65
      %p67 = scmp.eq.s32.totalorder %s20, 0
      %p68 = por %p66, %p67
      %s70 = sadd.s32 %s69, 1
      %p73 = scmp.eq.s32.totalorder %s14, 1
      %p74 = scmp.ne.s32.totalorder %s69, %s71
      %p75 = scmp.eq.s32.totalorder %s14, 0
      %p76 = por %p74, %p75
      %p77 = scmp.ne.s32.totalorder %s69, %s71
      %p78 = scmp.eq.s32.totalorder %s19, 1
      %p79 = por %p77, %p78
      %p80 = scmp.ne.s32.totalorder %s71, %s72
      %p81 = scmp.eq.s32.totalorder %s19, 0
      %p82 = por %p80, %p81
      %p83 = scmp.ne.s32.totalorder %s71, %s72
      %p84 = scmp.eq.s32.totalorder %s20, 1
      %p85 = por %p83, %p84
      %p87 = scmp.ne.s32.totalorder %s72, %s86
      %p88 = scmp.eq.s32.totalorder %s20, 0
      %p89 = por %p87, %p88
      %s90 = ssub.s32 %s14, %s21
      %p91 = scmp.eq.s32.totalorder %s90, 0
      %s93 = sadd.s32 %s92, 1
      %s94 = scalar_select %p91, %s92, %s93
      %p97 = pneg %p91
      %p98 = scmp.eq.s32.totalorder %s14, 1
      %p99 = por %p97, %p98
      %p100 = scmp.ne.s32.totalorder %s92, %s95
      %p101 = scmp.eq.s32.totalorder %s14, 0
      %p102 = por %p100, %p101
      %p103 = scmp.ne.s32.totalorder %s92, %s95
      %p104 = scmp.eq.s32.totalorder %s19, 1
      %p105 = por %p103, %p104
      %p106 = scmp.ne.s32.totalorder %s95, %s96
      %p107 = scmp.eq.s32.totalorder %s19, 0
      %p108 = por %p106, %p107
      %p109 = scmp.ne.s32.totalorder %s95, %s96
      %p110 = scmp.eq.s32.totalorder %s20, 1
      %p111 = por %p109, %p110
      %p113 = scmp.ne.s32.totalorder %s96, %s112
      %p114 = scmp.eq.s32.totalorder %s20, 0
      %p115 = por %p113, %p114
      %s117 = sadd.s32 %s116, 1
      %p120 = scmp.eq.s32.totalorder %s14, 1
      %p121 = scmp.ne.s32.totalorder %s116, %s118
      %p122 = scmp.eq.s32.totalorder %s14, 0
      %p123 = por %p121, %p122
      %p124 = scmp.ne.s32.totalorder %s116, %s118
      %p125 = scmp.eq.s32.totalorder %s19, 1
      %p126 = por %p124, %p125
      %p127 = scmp.ne.s32.totalorder %s118, %s119
      %p128 = scmp.eq.s32.totalorder %s19, 0
      %p129 = por %p127, %p128
      %p130 = scmp.ne.s32.totalorder %s118, %s119
      %p131 = scmp.eq.s32.totalorder %s20, 1
      %p132 = por %p130, %p131
      %p134 = scmp.ne.s32.totalorder %s119, %s133
      %p135 = scmp.eq.s32.totalorder %s20, 0
      %p136 = por %p134, %p135
      %s137 = ssub.s32 %s14, %s21
      %p138 = scmp.eq.s32.totalorder %s137, 0
      %s140 = sadd.s32 %s139, 1
      %s141 = scalar_select %p138, %s139, %s140
      %p144 = pneg %p138
      %p145 = scmp.eq.s32.totalorder %s14, 1
      %p146 = por %p144, %p145
      %p147 = scmp.ne.s32.totalorder %s139, %s142
      %p148 = scmp.eq.s32.totalorder %s14, 0
      %p149 = por %p147, %p148
      %p150 = scmp.ne.s32.totalorder %s139, %s142
      %p151 = scmp.eq.s32.totalorder %s19, 1
      %p152 = por %p150, %p151
      %p153 = scmp.ne.s32.totalorder %s142, %s143
      %p154 = scmp.eq.s32.totalorder %s19, 0
      %p155 = por %p153, %p154
      %p156 = scmp.ne.s32.totalorder %s142, %s143
      %p157 = scmp.eq.s32.totalorder %s20, 1
      %p158 = por %p156, %p157
      %p160 = scmp.ne.s32.totalorder %s143, %s159
      %p161 = scmp.eq.s32.totalorder %s20, 0
      %p162 = por %p160, %p161
      %p163 = scmp.le.s32.totalorder 1, %s14
      %p164 = scmp.lt.s32.totalorder %s14, 3
      %p165 = pnand %p163, %p164
      %p166 = pneg %p165
      // Predicated region
      $region9: #{tpu_custom_call.1} parent=5 // pred_check
        _
      $region10: #{tpu_custom_call.1} parent=5 // pred_check_branch
        %168 = sbr.rel (%p165) target = $region12
      $region11: #{tpu_custom_call.1} parent=5 // pred_region
        %s169 = ssub.s32 %s14, 1
        // Predicated region
        $region13: #{tpu_custom_call.1} parent=11 // pred_check
          %p170 = pneg %p61
        $region14: #{tpu_custom_call.1} parent=11 // pred_check_branch
          %172 = sbr.rel (%p170) target = $region16
        $region15: #{tpu_custom_call.1} parent=11 // pred_region
          _
        $region16: #{tpu_custom_call.1} parent=11 // pred_fallthru
          _
        // Predicated region
        $region17: #{tpu_custom_call.1} parent=11 // pred_check
          %p173 = pneg %p82
        $region18: #{tpu_custom_call.1} parent=11 // pred_check_branch
          %175 = sbr.rel (%p173) target = $region20
        $region19: #{tpu_custom_call.1} parent=11 // pred_region
          _
        $region20: #{tpu_custom_call.1} parent=11 // pred_fallthru
          _
        // Predicated region
        $region21: #{tpu_custom_call.1} parent=11 // pred_check
          %p176 = pneg %p129
        $region22: #{tpu_custom_call.1} parent=11 // pred_check_branch
          %178 = sbr.rel (%p176) target = $region24
        $region23: #{tpu_custom_call.1} parent=11 // pred_region
          _
        $region24: #{tpu_custom_call.1} parent=11 // pred_fallthru
          _
      $region12: #{tpu_custom_call.1} parent=5 // pred_fallthru
        _
      %p179 = scmp.lt.s32.totalorder %s14, 2
      // Predicated region
      $region25: #{tpu_custom_call.1} parent=5 // pred_check
        %p180 = pneg %p179
      $region26: #{tpu_custom_call.1} parent=5 // pred_check_branch
        %182 = sbr.rel (%p180) target = $region28
      $region27: #{tpu_custom_call.1} parent=5 // pred_region
        // Predicated region
        $region29: #{tpu_custom_call.1} parent=27 // pred_check
          %p183 = pneg %p34
        $region30: #{tpu_custom_call.1} parent=27 // pred_check_branch
          %185 = sbr.rel (%p183) target = $region32
        $region31: #{tpu_custom_call.1} parent=27 // pred_region
          %p186 = scmp.lt.s32.totalorder %s14, 1
          %s187 = scalar_select %p186, %s14, 1
          %s188 = smul.addr %s187, 8
          %s189 = scalar_lea.vmem %s0, %s188
        $region32: #{tpu_custom_call.1} parent=27 // pred_fallthru
          _
        // Predicated region
        $region33: #{tpu_custom_call.1} parent=27 // pred_check
          %p190 = pneg %p102
        $region34: #{tpu_custom_call.1} parent=27 // pred_check_branch
          %192 = sbr.rel (%p190) target = $region36
        $region35: #{tpu_custom_call.1} parent=27 // pred_region
          %p193 = scmp.lt.s32.totalorder %s14, 1
          %s194 = scalar_select %p193, %s14, 1
          %s195 = smul.addr %s194, 2
          %s196 = scalar_lea.vmem %s3, %s195
        $region36: #{tpu_custom_call.1} parent=27 // pred_fallthru
          _
      $region28: #{tpu_custom_call.1} parent=5 // pred_fallthru
        _
      %p197 = scmp.le.s32.totalorder 1, %s14
      %p198 = scmp.lt.s32.totalorder %s14, 3
      %p199 = pnand %p197, %p198
      %p200 = pneg %p199
      // Predicated region
      $region37: #{tpu_custom_call.1} parent=5 // pred_check
        _
      $region38: #{tpu_custom_call.1} parent=5 // pred_check_branch
        %202 = sbr.rel (%p199) target = $region40
      $region39: #{tpu_custom_call.1} parent=5 // pred_region
        %s203 = ssub.s32 %s14, 1
        %p204 = scmp.lt.s32.totalorder %s19, 1
        %s205 = scalar_select %p204, %s19, 1
        %s206 = smul.addr %s205, 8
        %s207 = scalar_lea.vmem %s0, %s206
        %p208 = pneg %p40
        %p209 = pneg %p37
        %p210 = pneg %p61
        %p211 = pneg %p58
        %p212 = pneg %p82
        %p213 = pneg %p79
        %p214 = scmp.lt.s32.totalorder %s19, 1
        %s215 = scalar_select %p214, %s19, 1
        %s216 = smul.addr %s215, 2
        %s217 = scalar_lea.vmem %s3, %s216
        %p218 = pneg %p108
        %p219 = pneg %p105
        %p220 = pneg %p129
        %p221 = pneg %p126
        %p222 = pneg %p155
        %p223 = pneg %p152
        %s224 = sand.u32 %s142, 1
        %s225 = scalar_lea.sflag [#allocation3], %s224
        %s226 = sand.u32 %s142, 1
        %s227 = smul.addr %s226, 8
        %s228 = scalar_lea.vmem [#allocation2], %s227
        %p229 = scmp.lt.s32.totalorder %s19, 1
        %s230 = scalar_select %p229, %s19, 1
        %s231 = smul.addr %s230, 8
        %s232 = scalar_lea.vmem %s0, %s231
        %p233 = scmp.lt.s32.totalorder %s19, 1
        %s234 = scalar_select %p233, %s19, 1
        %s235 = smul.addr %s234, 2
        %s236 = scalar_lea.vmem %s3, %s235
        %v238 = vld [vmem:[%s232] sm:$0xff]
        %v239 = vld [vmem:[%s1] sm:$0xff]
        %v240 = vld [vmem:[%s1 + $0x8] sm:$0xff]
        %vm241 = vcmask 130048
        %v243 = vsel %vm241, %v238, 0
        %245 = vmatpush.msra.mxu0 0.0
        %246 = vmatpush.msra.mxu0 0.0
        %247 = vmatpush.msra.mxu0 0.0
        %248 = vmatpush.msra.mxu0 0.0
        %249 = vmatpush.msra.mxu0 0.0
        %250 = vmatpush.msra.mxu0 0.0
        %251 = vmatpush.msra.mxu0 0.0
        %252 = vmatpush.msra.mxu0 0.0
        %253 = vmatpush.msra.mxu0 0.0
        %254 = vmatpush.msra.mxu0 0.0
        %255 = vmatpush.msra.mxu0 0.0
        %256 = vmatpush.msra.mxu0 0.0
        %257 = vmatpush.msra.mxu0 0.0
        %258 = vmatpush.msra.mxu0 0.0
        %259 = vmatpush.msra.mxu0 %v240
        %260 = vmatpush.msra.mxu0 %v239
        %261 = vmatmul.f32.gmra.mxu0 %v243
        %v262 = vpop.f32.mrf.mxu0
        %v263 = vadd.f32 0.0, %v262
        %264 = vdwg.mxu0
        %v265 = vtanh.pop %v263
        %v266 = vld [vmem:[%s2] sm:$0xff]
        %v267 = vld [vmem:[%s2 + $0x8] sm:$0xff]
        %v268 = vld [vmem:[%s2 + $0x10] sm:$0xff]
        %v269 = vld [vmem:[%s2 + $0x18] sm:$0xff]
        %v270 = vld [vmem:[%s2 + $0x20] sm:$0xff]
        %v271 = vld [vmem:[%s2 + $0x28] sm:$0xff]
        %v272 = vld [vmem:[%s2 + $0x30] sm:$0xff]
        %v273 = vld [vmem:[%s2 + $0x38] sm:$0xff]
        %v274 = vld [vmem:[%s2 + $0x40] sm:$0xff]
        %v275 = vld [vmem:[%s2 + $0x48] sm:$0xff]
        %v276 = vld [vmem:[%s2 + $0x50] sm:$0xff]
        %v277 = vld [vmem:[%s2 + $0x58] sm:$0xff]
        %v278 = vld [vmem:[%s2 + $0x60] sm:$0xff]
        %v279 = vld [vmem:[%s2 + $0x68] sm:$0xff]
        %v280 = vld [vmem:[%s2 + $0x70] sm:$0xff]
        %v281 = vld [vmem:[%s2 + $0x78] sm:$0xff]
        %282 = vmatpush.msra.mxu0 %v281
        %283 = vmatpush.msra.mxu0 %v280
        %284 = vmatpush.msra.mxu0 %v279
        %285 = vmatpush.msra.mxu0 %v278
        %286 = vmatpush.msra.mxu0 %v277
        %287 = vmatpush.msra.mxu0 %v276
        %288 = vmatpush.msra.mxu0 %v275
        %289 = vmatpush.msra.mxu0 %v274
        %290 = vmatpush.msra.mxu0 %v273
        %291 = vmatpush.msra.mxu0 %v272
        %292 = vmatpush.msra.mxu0 %v271
        %293 = vmatpush.msra.mxu0 %v270
        %294 = vmatpush.msra.mxu0 %v269
        %295 = vmatpush.msra.mxu0 %v268
        %296 = vmatpush.msra.mxu0 %v267
        %297 = vmatpush.msra.mxu0 %v266
        %298 = vmatmul.f32.gmra.mxu0 %v265
        %v299 = vpop.f32.mrf.mxu0
        %v300 = vadd.f32 0.0, %v299
        %301 = vdwg.mxu0
        %v302 = vld [vmem:[%s236] sm:$0x3]
        %v303 = vunpack.c.0.s8 %v302
        %v304 = vcvt.s32.f32 %v303
        %vm305 = vcmp.gt.f32.partialorder %v304, 0.0
        %307 = vset.pattern.permute.xlu0 0
        %308 = vperm.xlu0 %307, %v300
        %v309 = vpop.permute.xlu0 %308
        %311 = vset.pattern.permute.xlu0 4
        %312 = vperm.xlu0 %311, %v300
        %v313 = vpop.permute.xlu0 %312
        %v314 = vlaneseq
        %v315 = vand.u32 %v314, 127
        %v316 = vperm.slane %v313, %v315
        %vm317 = vcmask 1042434
        %v318 = vsel %vm317, %v316, %v316
        %vm319 = vcmask 1043459
        %v320 = vsel %vm319, %v316, %v318
        %vm321 = vcmask 1044484
        %v322 = vsel %vm321, %v316, %v320
        %vm323 = vcmask 1045509
        %v324 = vsel %vm323, %v316, %v322
        %vm325 = vcmask 1046534
        %v326 = vsel %vm325, %v316, %v324
        %vm327 = vcmask 1047559
        %v328 = vsel %vm327, %v316, %v326
        %v330 = vadd.f32 %v309, %v328
        %vm331 = vcmp.gt.f32.partialorder %v330, 0.0
        %v332 = vmul.f32 %v330, 0.2
        %v333 = vsel %vm331, %v330, %v332
        %v334 = vsel %vm305, %v333, -inf
        %vm335 = vcmask 64512
        %v336 = vsel %vm335, %v334, -inf
        %337 = vmax.xlane.f32.xlu0 %v336
        %v338 = vpop.xlane.xlu0 %337
        %v339 = vsub.f32 %v334, %v338
        %v340 = vmul.f32 %v339, 1.442695
        %v341 = vpow.pop %v340
        %v342 = vsel %vm335, %v341, 0.0
        %343 = vadd.xlane.f32.xlu0 %v342
        %v344 = vpop.xlane.xlu0 %343
        %v345 = vpack.c.bf16 %v341, %v341
        %v346 = vpack.c.bf16 %v263, %v263
        %v348 = vsel %vm335, %v345, 0
        %vm350 = vcmask 1043456
        %v352 = vsel %vm350, %v346, 0
        %354 = vmatpush.bf16.msra.mxu0 0
        %355 = vmatpush.bf16.msra.mxu0 0
        %356 = vmatpush.bf16.msra.mxu0 0
        %357 = vmatpush.bf16.msra.mxu0 0
        %358 = vmatpush.bf16.msra.mxu0 0
        %359 = vmatpush.bf16.msra.mxu0 0
        %360 = vmatpush.bf16.msra.mxu0 0
        %361 = vmatpush.bf16.msra.mxu0 %v352
        %362 = vmatmul.bf16.gmra.mxu0 %v348
        %v363 = vpop.f32.mrf.mxu0
        %v364 = vadd.f32 0.0, %v363
        %v365 = vpop.f32.mrf.mxu0
        %366 = vdwg.mxu0
        %v367 = vrcp.pop %v344
        %v368 = vmul.f32 %v364, %v367
        %369 = vset.pattern.permute.xlu0 1
        %370 = vperm.xlu0 %369, %v300
        %v371 = vpop.permute.xlu0 %370
        %373 = vset.pattern.permute.xlu0 5
        %374 = vperm.xlu0 %373, %v300
        %v375 = vpop.permute.xlu0 %374
        %v376 = vperm.slane %v375, %v315
        %v377 = vsel %vm317, %v376, %v376
        %v378 = vsel %vm319, %v376, %v377
        %v379 = vsel %vm321, %v376, %v378
        %v380 = vsel %vm323, %v376, %v379
        %v381 = vsel %vm325, %v376, %v380
        %v382 = vsel %vm327, %v376, %v381
        %v384 = vadd.f32 %v371, %v382
        %vm385 = vcmp.gt.f32.partialorder %v384, 0.0
        %v386 = vmul.f32 %v384, 0.2
        %v387 = vsel %vm385, %v384, %v386
        %v388 = vsel %vm305, %v387, -inf
        %v389 = vsel %vm335, %v388, -inf
        %390 = vmax.xlane.f32.xlu0 %v389
        %v391 = vpop.xlane.xlu0 %390
        %v392 = vsub.f32 %v388, %v391
        %v393 = vmul.f32 %v392, 1.442695
        %v394 = vpow.pop %v393
        %v395 = vsel %vm335, %v394, 0.0
        %396 = vadd.xlane.f32.xlu0 %v395
        %v397 = vpop.xlane.xlu0 %396
        %v398 = vpack.c.bf16 %v394, %v394
        %400 = vrot.lane.b32.xlu0 %v346, 96
        %v401 = vpop.permute.xlu0 %400
        %v403 = vsel %vm335, %v398, 0
        %v406 = vsel %vm350, %v401, 0
        %408 = vmatpush.bf16.msra.mxu0 0
        %409 = vmatpush.bf16.msra.mxu0 0
        %410 = vmatpush.bf16.msra.mxu0 0
        %411 = vmatpush.bf16.msra.mxu0 0
        %412 = vmatpush.bf16.msra.mxu0 0
        %413 = vmatpush.bf16.msra.mxu0 0
        %414 = vmatpush.bf16.msra.mxu0 0
        %415 = vmatpush.bf16.msra.mxu0 %v406
        %416 = vmatmul.bf16.gmra.mxu0 %v403
        %v417 = vpop.f32.mrf.mxu0
        %v418 = vadd.f32 0.0, %v417
        %v419 = vpop.f32.mrf.mxu0
        %420 = vdwg.mxu0
        %v421 = vrcp.pop %v397
        %v422 = vmul.f32 %v418, %v421
        %423 = vset.pattern.permute.xlu0 2
        %424 = vperm.xlu0 %423, %v300
        %v425 = vpop.permute.xlu0 %424
        %427 = vset.pattern.permute.xlu0 6
        %428 = vperm.xlu0 %427, %v300
        %v429 = vpop.permute.xlu0 %428
        %v430 = vperm.slane %v429, %v315
        %v431 = vsel %vm317, %v430, %v430
        %v432 = vsel %vm319, %v430, %v431
        %v433 = vsel %vm321, %v430, %v432
        %v434 = vsel %vm323, %v430, %v433
        %v435 = vsel %vm325, %v430, %v434
        %v436 = vsel %vm327, %v430, %v435
        %v438 = vadd.f32 %v425, %v436
        %vm439 = vcmp.gt.f32.partialorder %v438, 0.0
        %v440 = vmul.f32 %v438, 0.2
        %v441 = vsel %vm439, %v438, %v440
        %v442 = vsel %vm305, %v441, -inf
        %v443 = vsel %vm335, %v442, -inf
        %444 = vmax.xlane.f32.xlu0 %v443
        %v445 = vpop.xlane.xlu0 %444
        %v446 = vsub.f32 %v442, %v445
        %v447 = vmul.f32 %v446, 1.442695
        %v448 = vpow.pop %v447
        %v449 = vsel %vm335, %v448, 0.0
        %450 = vadd.xlane.f32.xlu0 %v449
        %v451 = vpop.xlane.xlu0 %450
        %v452 = vpack.c.bf16 %v448, %v448
        %453 = vrot.lane.b32.xlu0 %v346, 64
        %v454 = vpop.permute.xlu0 %453
        %v456 = vsel %vm335, %v452, 0
        %v459 = vsel %vm350, %v454, 0
        %461 = vmatpush.bf16.msra.mxu0 0
        %462 = vmatpush.bf16.msra.mxu0 0
        %463 = vmatpush.bf16.msra.mxu0 0
        %464 = vmatpush.bf16.msra.mxu0 0
        %465 = vmatpush.bf16.msra.mxu0 0
        %466 = vmatpush.bf16.msra.mxu0 0
        %467 = vmatpush.bf16.msra.mxu0 0
        %468 = vmatpush.bf16.msra.mxu0 %v459
        %469 = vmatmul.bf16.gmra.mxu0 %v456
        %v470 = vpop.f32.mrf.mxu0
        %v471 = vadd.f32 0.0, %v470
        %v472 = vpop.f32.mrf.mxu0
        %473 = vdwg.mxu0
        %v474 = vrcp.pop %v451
        %v475 = vmul.f32 %v471, %v474
        %476 = vset.pattern.permute.xlu0 3
        %477 = vperm.xlu0 %476, %v300
        %v478 = vpop.permute.xlu0 %477
        %480 = vset.pattern.permute.xlu0 7
        %481 = vperm.xlu0 %480, %v300
        %v482 = vpop.permute.xlu0 %481
        %v483 = vperm.slane %v482, %v315
        %v484 = vsel %vm317, %v483, %v483
        %v485 = vsel %vm319, %v483, %v484
        %v486 = vsel %vm321, %v483, %v485
        %v487 = vsel %vm323, %v483, %v486
        %v488 = vsel %vm325, %v483, %v487
        %v489 = vsel %vm327, %v483, %v488
        %v491 = vadd.f32 %v478, %v489
        %vm492 = vcmp.gt.f32.partialorder %v491, 0.0
        %v493 = vmul.f32 %v491, 0.2
        %v494 = vsel %vm492, %v491, %v493
        %v495 = vsel %vm305, %v494, -inf
        %v496 = vsel %vm335, %v495, -inf
        %497 = vmax.xlane.f32.xlu0 %v496
        %v498 = vpop.xlane.xlu0 %497
        %v499 = vsub.f32 %v495, %v498
        %v500 = vmul.f32 %v499, 1.442695
        %v501 = vpow.pop %v500
        %v502 = vsel %vm335, %v501, 0.0
        %503 = vadd.xlane.f32.xlu0 %v502
        %v504 = vpop.xlane.xlu0 %503
        %v505 = vpack.c.bf16 %v501, %v501
        %506 = vrot.lane.b32.xlu0 %v346, 32
        %v507 = vpop.permute.xlu0 %506
        %v509 = vsel %vm335, %v505, 0
        %v512 = vsel %vm350, %v507, 0
        %514 = vmatpush.bf16.msra.mxu0 0
        %515 = vmatpush.bf16.msra.mxu0 0
        %516 = vmatpush.bf16.msra.mxu0 0
        %517 = vmatpush.bf16.msra.mxu0 0
        %518 = vmatpush.bf16.msra.mxu0 0
        %519 = vmatpush.bf16.msra.mxu0 0
        %520 = vmatpush.bf16.msra.mxu0 0
        %521 = vmatpush.bf16.msra.mxu0 %v512
        %522 = vmatmul.bf16.gmra.mxu0 %v509
        %v523 = vpop.f32.mrf.mxu0
        %v524 = vadd.f32 0.0, %v523
        %v525 = vpop.f32.mrf.mxu0
        %526 = vdwg.mxu0
        %v527 = vrcp.pop %v504
        %v528 = vmul.f32 %v524, %v527
        %530 = vrot.lane.b32.xlu0 %v422, 32
        %v531 = vpop.permute.xlu0 %530
        %534 = vrot.lane.b32.xlu0 %v475, 64
        %v535 = vpop.permute.xlu0 %534
        %538 = vrot.lane.b32.xlu0 %v528, 96
        %v539 = vpop.permute.xlu0 %538
        %vm541 = vcmask 261120
        %v542 = vsel %vm541, %v368, %v531
        %vm543 = vcmask 523264
        %v544 = vsel %vm543, %v542, %v535
        %vm545 = vcmask 785408
        %v546 = vsel %vm545, %v544, %v539
        %v547 = vld [vmem:[%s4] sm:$0x1]
        %v549 = vperm.slane %v547, 0
        %v551 = vadd.f32 %v546, %v549
        %552 = vst [vmem:[%s228] sm:$0xff] %v551
        %s553 = sand.u32 %s142, 1
        %s554 = scalar_lea.sflag [#allocation3], %s553
        %s555 = sand.u32 %s142, 1
        %s556 = smul.addr %s555, 8
        %s557 = scalar_lea.vmem [#allocation2], %s556
        // Predicated region
        $region41: #{tpu_custom_call.1} parent=39 // pred_check
          %p558 = pneg %p152
        $region42: #{tpu_custom_call.1} parent=39 // pred_check_branch
          %560 = sbr.rel (%p558) target = $region44
        $region43: #{tpu_custom_call.1} parent=39 // pred_region
          %562 = vsyncadd %s554, 0
          %s563 = smul.addr %s19, 8
          %s564 = scalar_lea.hbm %s5, %s563
          %s566 = sshll.u32 %s557, 4
          %s567 = int_to_ptr.vmem [resolvable:$true] %s566
          %s568 = sshll.u32 %s564, 4
          %s569 = int_to_ptr.hbm [resolvable:$true] %s568
          %571 = dma.vmem_to_hbm [thread:$0]  %s567, 128, %s569, %s554
        $region44: #{tpu_custom_call.1} parent=39 // pred_fallthru
          _
      $region40: #{tpu_custom_call.1} parent=5 // pred_fallthru
        _
      %p572 = scmp.le.s32.totalorder 2, %s14
      // Predicated region
      $region45: #{tpu_custom_call.1} parent=5 // pred_check
        %p573 = pneg %p572
      $region46: #{tpu_custom_call.1} parent=5 // pred_check_branch
        %575 = sbr.rel (%p573) target = $region48
      $region47: #{tpu_custom_call.1} parent=5 // pred_region
        %s576 = ssub.s32 %s14, 2
        // Predicated region
        $region49: #{tpu_custom_call.1} parent=47 // pred_check
          %p577 = pneg %p158
        $region50: #{tpu_custom_call.1} parent=47 // pred_check_branch
          %579 = sbr.rel (%p577) target = $region52
        $region51: #{tpu_custom_call.1} parent=47 // pred_region
          %s580 = sand.u32 %s143, 1
          %s581 = scalar_lea.sflag [#allocation3], %s580
          %s582 = sand.u32 %s143, 1
          %s583 = smul.addr %s582, 8
          %s584 = scalar_lea.vmem [#allocation2], %s583
          %586 = dma.done %s581, 128
        $region52: #{tpu_custom_call.1} parent=47 // pred_fallthru
          _
      $region48: #{tpu_custom_call.1} parent=5 // pred_fallthru
        _
    $region6: #{tpu_custom_call.1} parent=1 // loop_footer
      %s18 = sadd.s32 1, %s14
    $region7: #{tpu_custom_call.1} parent=1 // loop_footer_branch
      %13 = sbr.rel target = $region3
    $region8: #{tpu_custom_call.1} parent=1 // loop_exit
      _
    %587 = vsyncpa [#allocation3], 1
    %s588 = scalar_lea.sflag [#allocation3], 1
    %589 = vsyncpa %s588, 1

</llo_original>
